<compile_context>
chip_gen: v7x
topology: tpu7x:2x2x1
jax: 0.10.0
libtpu: 0.0.40
codegen_flags: <defaults>
</compile_context>

<pallas_src>
import functools

import jax
import jax.numpy as jnp
from jax import lax
from jax.experimental import pallas as pl
from jax.experimental.pallas import tpu as pltpu


def _round_up(x, m):
    return ((x + m - 1) // m) * m


def _vmem_capacity_bytes():
    try:
        return int(pltpu.get_tpu_info().vmem_capacity_bytes)
    except Exception:
        return 64 << 20  # conservative fallback: v7x per-TensorCore VMEM


def _fused_vmem_bytes(tm, tk, mp, kp, dp):
    """Working set of the fused propagation kernel (bytes)."""
    return (
        2 * tm * tk * 2      # R tiles: double-buffered bf16 stream (dominant)
        + mp * dp * 2        # resident x_users, bf16, single-buffered
        + kp * dp * 2        # resident x_items, bf16, single-buffered
        + 2 * tm * dp * 4    # users-output tiles, f32 (2 buffers)
        + 2 * kp * dp * 4    # items-output, f32, resident (count 2 to be safe)
    )


def _tile_plan(n_users, n_items, emb_size, tm=512, tk=2048):
    """Pick (tm, tk) and padded dims that fit this generation's VMEM."""
    dp = _round_up(emb_size, 128)                      # lane-dense output
    tm_eff = min(tm, _round_up(n_users, 16))           # bf16 sublane packing
    tk_eff = min(tk, _round_up(n_items, 128))
    mp = _round_up(n_users, tm_eff)
    kp = _round_up(n_items, tk_eff)

    cap = _vmem_capacity_bytes()
    budget_cap = max(cap - (16 << 20), 32 << 20)       # Mosaic scratch headroom

    while _fused_vmem_bytes(tm_eff, tk_eff, mp, kp, dp) > budget_cap and tk_eff > 512:
        tk_eff = max(512, _round_up(tk_eff // 2, 128))
        kp = _round_up(n_items, tk_eff)
    while _fused_vmem_bytes(tm_eff, tk_eff, mp, kp, dp) > budget_cap and tm_eff > 128:
        tm_eff = max(128, _round_up(tm_eff // 2, 16))
        mp = _round_up(n_users, tm_eff)

    vmem_limit = int(min(
        max(_fused_vmem_bytes(tm_eff, tk_eff, mp, kp, dp) + (4 << 20), 32 << 20),
        budget_cap))
    return tm_eff, tk_eff, mp, kp, dp, vmem_limit


def _prop_kernel(r_ref, xu_ref, xi_ref, ou_ref, oi_ref, *, tm, tk):
    """Fused bipartite propagation for one (tm, tk) tile of R.

    Grid = (row tiles of R, col tiles of R); both axes 'arbitrary' because
    both outputs carry accumulator state (users across kk, items across i).
      ou_ref (users): (tm, dp) block, resident across kk, accumulated in f32.
      oi_ref (items): (kp, dp) block, resident across the WHOLE grid
                      (constant index_map), accumulated into its kk-slice.
    """
    i = pl.program_id(0)
    kk = pl.program_id(1)

    @pl.when(kk == 0)
    def _():
        ou_ref[...] = jnp.zeros_like(ou_ref)

    @pl.when((i == 0) & (kk == 0))
    def _():
        oi_ref[...] = jnp.zeros_like(oi_ref)

    r = r_ref[...]                                    # (tm, tk) bf16, streamed
    i0 = pl.multiple_of(i * tm, tm)
    k0 = pl.multiple_of(kk * tk, tk)
    xu = xu_ref[pl.ds(i0, tm), :]                     # (tm, dp) bf16 resident
    xi = xi_ref[pl.ds(k0, tk), :]                     # (tk, dp) bf16 resident

    # new_users[i] += R_tile @ x_items[kk]     (bf16 x bf16 -> f32 on the MXU)
    ou_ref[...] += jnp.dot(r, xi, preferred_element_type=jnp.float32)

    # new_items[kk] += R_tile^T @ x_users[i]   (transposed contraction, no R^T)
    oi_ref[pl.ds(k0, tk), :] += lax.dot_general(
        r, xu,
        dimension_numbers=(((0,), (0,)), ((), ())),
        preferred_element_type=jnp.float32,
    )


@functools.partial(jax.jit, static_argnames=("tm", "tk", "vmem_limit"))
def _propagate_layer(r_pad, x_users, x_items, *, tm, tk, vmem_limit):
    """One LRGCCF layer: (R @ x_items, R^T @ x_users) from a single R pass."""
    mp, kp = r_pad.shape
    nu, d = x_users.shape
    ni = x_items.shape[0]
    dp = _round_up(d, 128)

    xu = jnp.pad(x_users.astype(jnp.bfloat16), ((0, mp - nu), (0, dp - d)))
    xi = jnp.pad(x_items.astype(jnp.bfloat16), ((0, kp - ni), (0, dp - d)))

    cost = pl.CostEstimate(
        flops=4 * mp * kp * dp,
        transcendentals=0,
        bytes_accessed=mp * kp * 2 + (mp + kp) * dp * 2 + (mp + kp) * dp * 4,
    )

    new_u, new_i = pl.pallas_call(
        functools.partial(_prop_kernel, tm=tm, tk=tk),
        out_shape=(
            jax.ShapeDtypeStruct((mp, dp), jnp.float32),
            jax.ShapeDtypeStruct((kp, dp), jnp.float32),
        ),
        grid_spec=pltpu.PrefetchScalarGridSpec(
            num_scalar_prefetch=0,
            grid=(mp // tm, kp // tk),
            in_specs=[
                pl.BlockSpec((tm, tk), lambda i, kk: (i, kk)),   # R tile stream
                pl.BlockSpec((mp, dp), lambda i, kk: (0, 0),     # x_users resident
                             pipeline_mode=pl.Buffered(1)),
                pl.BlockSpec((kp, dp), lambda i, kk: (0, 0),     # x_items resident
                             pipeline_mode=pl.Buffered(1)),
            ],
            out_specs=(
                pl.BlockSpec((tm, dp), lambda i, kk: (i, 0)),    # users acc
                pl.BlockSpec((kp, dp), lambda i, kk: (0, 0)),    # items acc (resident)
            ),
        ),
        compiler_params=pltpu.CompilerParams(
            # Both grid axes carry accumulator state -> no megacore split.
            dimension_semantics=("arbitrary", "arbitrary"),
            vmem_limit_bytes=vmem_limit,
        ),
        cost_estimate=cost,
    )(r_pad, xu, xi)
    # TODO(synk): for item counts where the resident (kp, dp) f32 items
    # accumulator no longer fits v7x's 64 MiB VMEM, switch it to an
    # input_output_aliases-based HBM accumulator instead of shrinking tiles.
    return new_u[:nu, :d], new_i[:ni, :d]


class LRGCCF:
    """JAX/Pallas re-implementation of LRGCCF's graph-propagation forward.

    `norm_r` is the symmetric-normalized (n_users, n_items) interaction block
    (the only nonzero block of the bipartite adjacency); propagation uses it
    and its transpose implicitly via the fused kernel.
    """

    def __init__(self, n_users, n_items, norm_r, emb_size, layers, key,
                 *, tm=512, tk=2048):
        self.n_users = n_users
        self.n_items = n_items
        self.emb_size = emb_size
        self.layers = layers
        self.norm_r = norm_r

        (self._tm, self._tk, self._mp, self._kp, self._dp,
         self._vmem_limit) = _tile_plan(n_users, n_items, emb_size, tm, tk)

        # Cast + pad the adjacency block ONCE (no per-forward cast, no R^T).
        self._r_pad = jnp.pad(
            norm_r.astype(jnp.bfloat16),
            ((0, self._mp - n_users), (0, self._kp - n_items)))

        ku, ki = jax.random.split(key)
        # nn.init.normal_(std=0.01) equivalent, deterministic via PRNGKey.
        self.user_emb = 0.01 * jax.random.normal(
            ku, (n_users, emb_size), dtype=jnp.float32)
        self.item_emb = 0.01 * jax.random.normal(
            ki, (n_items, emb_size), dtype=jnp.float32)

    def forward(self, norm_r=None):
        # `norm_r` kept for API parity with the torch module; the adjacency is
        # fixed at construction (pre-cast/padded bf16), same as self.adj there.
        del norm_r
        x = jnp.concatenate([self.user_emb, self.item_emb], axis=0)
        all_emb = [x]
        for _ in range(self.layers):
            xu, xi = x[: self.n_users], x[self.n_users:]
            new_u, new_i = _propagate_layer(
                self._r_pad, xu, xi,
                tm=self._tm, tk=self._tk, vmem_limit=self._vmem_limit)
            x = jnp.concatenate([new_u, new_i], axis=0)
            all_emb.append(x)
        return all_emb

    def fusion(self, embeddings):
        return jnp.concatenate(embeddings, axis=1)

    def split_emb(self, embeddings):
        return embeddings[: self.n_users], embeddings[self.n_users:]

    def propagate(self):
        all_emb = self.forward(self.norm_r)
        f_emb = self.fusion(all_emb)
        return self.split_emb(f_emb)


def _build_norm_r(n_users, n_items, key):
    """Deterministic symmetric-normalized bipartite interaction block (~5% dense)."""
    r = jax.random.bernoulli(key, 0.05, (n_users, n_items)).astype(jnp.float32)
    deg_u = jnp.maximum(r.sum(axis=1), 1.0)
    deg_i = jnp.maximum(r.sum(axis=0), 1.0)
    return r / jnp.sqrt(deg_u)[:, None] / jnp.sqrt(deg_i)[None, :]


if __name__ == "__main__":
    key = jax.random.PRNGKey(0)
    k_adj, k_emb = jax.random.split(key)

    n_users, n_items = 96, 160          # N = 256
    emb_size, layers = 64, 2

    norm_r = _build_norm_r(n_users, n_items, k_adj)
    model = LRGCCF(n_users, n_items, norm_r, emb_size, layers, k_emb)

    all_emb = model.forward()
    all_emb = [jax.block_until_ready(e) for e in all_emb]

    # Cross-check each propagation step against XLA, using the same
    # bf16-rounded operands the kernel consumes (R and x bf16, f32 accum).
    r_b = norm_r.astype(jnp.bfloat16).astype(jnp.float32)
    x0 = jnp.concatenate([model.user_emb, model.item_emb], axis=0)
    assert jnp.allclose(all_emb[0], x0)
    for i in range(1, layers + 1):
        prev = all_emb[i - 1].astype(jnp.bfloat16).astype(jnp.float32)
        ref = jnp.concatenate(
            [
                jnp.dot(r_b, prev[n_users:], precision=lax.Precision.HIGHEST),
                jnp.dot(r_b.T, prev[:n_users], precision=lax.Precision.HIGHEST),
            ],
            axis=0,
        )
        assert all_emb[i].shape == (n_users + n_items, emb_size)
        assert jnp.allclose(all_emb[i], ref, atol=1e-4, rtol=2e-2), i

    user_emb, item_emb = model.propagate()
    jax.block_until_ready(user_emb)
    jax.block_until_ready(item_emb)
    assert user_emb.shape == (n_users, emb_size * (layers + 1))
    assert item_emb.shape == (n_items, emb_size * (layers + 1))

    print("KERNEL_OK")
</pallas_src>

<mosaic_0001>
module attributes {stable_mosaic.version = 11 : i64} {
  func.func @_prop_kernel(%arg0: i32, %arg1: i32, %arg2: memref<96x256xbf16, #tpu.memory_space<vmem>>, %arg3: memref<96x128xbf16, #tpu.memory_space<vmem>>, %arg4: memref<256x128xbf16, #tpu.memory_space<vmem>>, %arg5: memref<96x128xf32, #tpu.memory_space<vmem>>, %arg6: memref<256x128xf32, #tpu.memory_space<vmem>>) attributes {dimension_semantics = [#tpu.dimension_semantics<arbitrary>, #tpu.dimension_semantics<arbitrary>], iteration_bounds = array<i64: 1, 1>, scalar_prefetch = 0 : i64, scratch_operands = 0 : i64, tpu.core_type = #tpu.core_type<tc>, window_params = [{transform_indices = @transform_0, window_bounds = array<i64: 96, 256>}, {pipeline_mode = #tpu.pipeline_mode<synchronous>, transform_indices = @transform_1, window_bounds = array<i64: 96, 128>}, {pipeline_mode = #tpu.pipeline_mode<synchronous>, transform_indices = @transform_2, window_bounds = array<i64: 256, 128>}, {transform_indices = @transform_3, window_bounds = array<i64: 96, 128>}, {pipeline_mode = #tpu.pipeline_mode<synchronous>, transform_indices = @transform_4, window_bounds = array<i64: 256, 128>}]} {
    %c0_i32 = arith.constant 0 : i32
    %0 = arith.cmpi eq, %arg1, %c0_i32 : i32
    %1 = arith.extui %0 : i1 to i32
    %c0_i32_0 = arith.constant 0 : i32
    %2 = arith.cmpi ne, %1, %c0_i32_0 : i32
    scf.if %2 {
      %cst_14 = arith.constant 0.000000e+00 : f32
      %27 = vector.broadcast %cst_14 : f32 to vector<96x128xf32>
      %c0_15 = arith.constant 0 : index
      %c0_16 = arith.constant 0 : index
      %28 = vector.load %arg5[%c0_15, %c0_16] : memref<96x128xf32, #tpu.memory_space<vmem>>, vector<96x128xf32>
      tpu.vector_store %arg5[%c0_15, %c0_16], %27 {strides = array<i32>} : memref<96x128xf32, #tpu.memory_space<vmem>>, vector<96x128xf32>,
    } else {
    }
    %c0_i32_1 = arith.constant 0 : i32
    %3 = arith.cmpi eq, %arg0, %c0_i32_1 : i32
    %c0_i32_2 = arith.constant 0 : i32
    %4 = arith.cmpi eq, %arg1, %c0_i32_2 : i32
    %5 = arith.andi %3, %4 : i1
    %6 = arith.extui %5 : i1 to i32
    %c0_i32_3 = arith.constant 0 : i32
    %7 = arith.cmpi ne, %6, %c0_i32_3 : i32
    scf.if %7 {
      %cst_14 = arith.constant 0.000000e+00 : f32
      %27 = vector.broadcast %cst_14 : f32 to vector<256x128xf32>
      %c0_15 = arith.constant 0 : index
      %c0_16 = arith.constant 0 : index
      %28 = vector.load %arg6[%c0_15, %c0_16] : memref<256x128xf32, #tpu.memory_space<vmem>>, vector<256x128xf32>
      tpu.vector_store %arg6[%c0_15, %c0_16], %27 {strides = array<i32>} : memref<256x128xf32, #tpu.memory_space<vmem>>, vector<256x128xf32>,
    } else {
    }
    %c0 = arith.constant 0 : index
    %c0_4 = arith.constant 0 : index
    %8 = vector.load %arg2[%c0, %c0_4] : memref<96x256xbf16, #tpu.memory_space<vmem>>, vector<96x256xbf16>
    %c96_i32 = arith.constant 96 : i32
    %9 = arith.muli %arg0, %c96_i32 : i32
    %10 = tpu.assume_multiple %9, 96 : i32
    %c256_i32 = arith.constant 256 : i32
    %11 = arith.muli %arg1, %c256_i32 : i32
    %12 = tpu.assume_multiple %11, 256 : i32
    %13 = arith.index_cast %10 : i32 to index
    %c0_5 = arith.constant 0 : index
    %14 = vector.load %arg3[%13, %c0_5] : memref<96x128xbf16, #tpu.memory_space<vmem>>, vector<96x128xbf16>
    %15 = arith.index_cast %12 : i32 to index
    %c0_6 = arith.constant 0 : index
    %16 = vector.load %arg4[%15, %c0_6] : memref<256x128xbf16, #tpu.memory_space<vmem>>, vector<256x128xbf16>
    %c0_7 = arith.constant 0 : index
    %c0_8 = arith.constant 0 : index
    %17 = vector.load %arg5[%c0_7, %c0_8] : memref<96x128xf32, #tpu.memory_space<vmem>>, vector<96x128xf32>
    %cst = arith.constant dense<0.000000e+00> : vector<96x128xf32>
    %18 = tpu.matmul %8, %16, %cst {dimension_numbers = #tpu.dot_dimension_numbers<[1], [0], [0], [1], [0, 0, 1, 1], [], []>} : vector<96x256xbf16>, vector<256x128xbf16>, vector<96x128xf32> -> vector<96x128xf32>
    %19 = arith.addf %17, %18 : vector<96x128xf32>
    %c0_9 = arith.constant 0 : index
    %c0_10 = arith.constant 0 : index
    %20 = vector.load %arg5[%c0_9, %c0_10] : memref<96x128xf32, #tpu.memory_space<vmem>>, vector<96x128xf32>
    tpu.vector_store %arg5[%c0_9, %c0_10], %19 {strides = array<i32>} : memref<96x128xf32, #tpu.memory_space<vmem>>, vector<96x128xf32>,
    %21 = arith.index_cast %12 : i32 to index
    %c0_11 = arith.constant 0 : index
    %22 = vector.load %arg6[%21, %c0_11] : memref<256x128xf32, #tpu.memory_space<vmem>>, vector<256x128xf32>
    %cst_12 = arith.constant dense<0.000000e+00> : vector<256x128xf32>
    %23 = tpu.matmul %8, %14, %cst_12 {dimension_numbers = #tpu.dot_dimension_numbers<[0], [0], [1], [1], [0, 1, 1, 1], [], []>} : vector<96x256xbf16>, vector<96x128xbf16>, vector<256x128xf32> -> vector<256x128xf32>
    %24 = arith.addf %22, %23 : vector<256x128xf32>
    %25 = arith.index_cast %12 : i32 to index
    %c0_13 = arith.constant 0 : index
    %26 = vector.load %arg6[%25, %c0_13] : memref<256x128xf32, #tpu.memory_space<vmem>>, vector<256x128xf32>
    tpu.vector_store %arg6[%25, %c0_13], %24 {strides = array<i32>} : memref<256x128xf32, #tpu.memory_space<vmem>>, vector<256x128xf32>,
    return
  }
  func.func @transform_0(%arg0: i32, %arg1: i32) -> (i32, i32) {
    %c0_i32 = arith.constant 0 : i32
    return %arg0, %arg1 : i32, i32
  }
  func.func @transform_1(%arg0: i32, %arg1: i32) -> (i32, i32) {
    %c0_i32 = arith.constant 0 : i32
    %c0_i32_0 = arith.constant 0 : i32
    %c0_i32_1 = arith.constant 0 : i32
    return %c0_i32, %c0_i32_0 : i32, i32
  }
  func.func @transform_2(%arg0: i32, %arg1: i32) -> (i32, i32) {
    %c0_i32 = arith.constant 0 : i32
    %c0_i32_0 = arith.constant 0 : i32
    %c0_i32_1 = arith.constant 0 : i32
    return %c0_i32, %c0_i32_0 : i32, i32
  }
  func.func @transform_3(%arg0: i32, %arg1: i32) -> (i32, i32) {
    %c0_i32 = arith.constant 0 : i32
    %c0_i32_0 = arith.constant 0 : i32
    return %arg0, %c0_i32 : i32, i32
  }
  func.func @transform_4(%arg0: i32, %arg1: i32) -> (i32, i32) {
    %c0_i32 = arith.constant 0 : i32
    %c0_i32_0 = arith.constant 0 : i32
    %c0_i32_1 = arith.constant 0 : i32
    return %c0_i32, %c0_i32_0 : i32, i32
  }
}

</mosaic_0001>

<llo_original>
// kernel: _propagate_layer.1
$region0: #{_propagate_layer.1}
  #allocation0 [shape = 'u32[]', space=smem, size = 0x4, offset = 0x4, fixed_abs, tag = 'smem constant byte address 0x4 - core index']
  #allocation1 [shape = 'u32[144,128]{1,0:T(1,128)}', space=vmem, size = 0x12000, scoped, tag = 'internal scratch']
  %s0 = inlined_call_operand.vmem [shape: bf16[96,256], index: 0, kind: input, shape index: {}]
  %s1 = inlined_call_operand.vmem [shape: bf16[96,128], index: 1, kind: input, shape index: {}]
  %s2 = inlined_call_operand.vmem [shape: bf16[256,128], index: 2, kind: input, shape index: {}]
  %s3 = inlined_call_operand.vmem [shape: f32[96,128], index: 3, kind: output, shape index: {0}]
  %s4 = inlined_call_operand.vmem [shape: f32[256,128], index: 4, kind: output, shape index: {1}]
  %5 = xla_tuple %s3, %s4
  %s6 = sld [smem:[#allocation0]]
  $region38: #{_propagate_layer.1} parent=0
    _
  %s8 = ssub.s32 1, %s6
  %s9 = scalar_select 0, %s8, %s6
  // Predicated region
  $region2: #{_propagate_layer.1} parent=0 // pred_check
    _
  $region3: #{_propagate_layer.1} parent=0 // pred_check_branch
    %11 = sbr.rel (0) target = $region5
  $region4: #{_propagate_layer.1} parent=0 // pred_region
    _
  $region5: #{_propagate_layer.1} parent=0 // pred_fallthru
    _
  // Predicated region
  $region6: #{_propagate_layer.1} parent=0 // pred_check
    _
  $region7: #{_propagate_layer.1} parent=0 // pred_check_branch
    %13 = sbr.rel (0) target = $region9
  $region8: #{_propagate_layer.1} parent=0 // pred_region
    _
  $region9: #{_propagate_layer.1} parent=0 // pred_fallthru
    _
  // Predicated region
  $region10: #{_propagate_layer.1} parent=0 // pred_check
    _
  $region11: #{_propagate_layer.1} parent=0 // pred_check_branch
    %15 = sbr.rel (0) target = $region13
  $region12: #{_propagate_layer.1} parent=0 // pred_region
    _
  $region13: #{_propagate_layer.1} parent=0 // pred_fallthru
    _
  %p17 = scmp.eq.s32.totalorder 0, 0
  // Predicated region
  $region14: #{_propagate_layer.1} parent=0 // pred_check
    %p18 = pneg %p17
  $region15: #{_propagate_layer.1} parent=0 // pred_check_branch
    %20 = sbr.rel (%p18) target = $region17
  $region16: #{_propagate_layer.1} parent=0 // pred_region
    %21 = vst [vmem:[%s3] sm:$0xff] 0.0
    %22 = vst [vmem:[%s3 + $0x8] sm:$0xff] 0.0
    %23 = vst [vmem:[%s3 + $0x10] sm:$0xff] 0.0
    %24 = vst [vmem:[%s3 + $0x18] sm:$0xff] 0.0
    %25 = vst [vmem:[%s3 + $0x20] sm:$0xff] 0.0
    %26 = vst [vmem:[%s3 + $0x28] sm:$0xff] 0.0
    %27 = vst [vmem:[%s3 + $0x30] sm:$0xff] 0.0
    %28 = vst [vmem:[%s3 + $0x38] sm:$0xff] 0.0
    %29 = vst [vmem:[%s3 + $0x40] sm:$0xff] 0.0
    %30 = vst [vmem:[%s3 + $0x48] sm:$0xff] 0.0
    %31 = vst [vmem:[%s3 + $0x50] sm:$0xff] 0.0
    %32 = vst [vmem:[%s3 + $0x58] sm:$0xff] 0.0
  $region17: #{_propagate_layer.1} parent=0 // pred_fallthru
    _
  %p33 = scmp.eq.s32.totalorder 0, 0
  %p34 = pnand %p33, %p17
  %p35 = pneg %p34
  // Predicated region
  $region18: #{_propagate_layer.1} parent=0 // pred_check
    _
  $region19: #{_propagate_layer.1} parent=0 // pred_check_branch
    %37 = sbr.rel (%p34) target = $region21
  $region20: #{_propagate_layer.1} parent=0 // pred_region
    %38 = vst [vmem:[%s4] sm:$0xff] 0.0
    %39 = vst [vmem:[%s4 + $0x8] sm:$0xff] 0.0
    %40 = vst [vmem:[%s4 + $0x10] sm:$0xff] 0.0
    %41 = vst [vmem:[%s4 + $0x18] sm:$0xff] 0.0
    %42 = vst [vmem:[%s4 + $0x20] sm:$0xff] 0.0
    %43 = vst [vmem:[%s4 + $0x28] sm:$0xff] 0.0
    %44 = vst [vmem:[%s4 + $0x30] sm:$0xff] 0.0
    %45 = vst [vmem:[%s4 + $0x38] sm:$0xff] 0.0
    %46 = vst [vmem:[%s4 + $0x40] sm:$0xff] 0.0
    %47 = vst [vmem:[%s4 + $0x48] sm:$0xff] 0.0
    %48 = vst [vmem:[%s4 + $0x50] sm:$0xff] 0.0
    %49 = vst [vmem:[%s4 + $0x58] sm:$0xff] 0.0
    %50 = vst [vmem:[%s4 + $0x60] sm:$0xff] 0.0
    %51 = vst [vmem:[%s4 + $0x68] sm:$0xff] 0.0
    %52 = vst [vmem:[%s4 + $0x70] sm:$0xff] 0.0
    %53 = vst [vmem:[%s4 + $0x78] sm:$0xff] 0.0
    %54 = vst [vmem:[%s4 + $0x80] sm:$0xff] 0.0
    %55 = vst [vmem:[%s4 + $0x88] sm:$0xff] 0.0
    %56 = vst [vmem:[%s4 + $0x90] sm:$0xff] 0.0
    %57 = vst [vmem:[%s4 + $0x98] sm:$0xff] 0.0
    %58 = vst [vmem:[%s4 + $0xa0] sm:$0xff] 0.0
    %59 = vst [vmem:[%s4 + $0xa8] sm:$0xff] 0.0
    %60 = vst [vmem:[%s4 + $0xb0] sm:$0xff] 0.0
    %61 = vst [vmem:[%s4 + $0xb8] sm:$0xff] 0.0
    %62 = vst [vmem:[%s4 + $0xc0] sm:$0xff] 0.0
    %63 = vst [vmem:[%s4 + $0xc8] sm:$0xff] 0.0
    %64 = vst [vmem:[%s4 + $0xd0] sm:$0xff] 0.0
    %65 = vst [vmem:[%s4 + $0xd8] sm:$0xff] 0.0
    %66 = vst [vmem:[%s4 + $0xe0] sm:$0xff] 0.0
    %67 = vst [vmem:[%s4 + $0xe8] sm:$0xff] 0.0
    %68 = vst [vmem:[%s4 + $0xf0] sm:$0xff] 0.0
    %69 = vst [vmem:[%s4 + $0xf8] sm:$0xff] 0.0
  $region21: #{_propagate_layer.1} parent=0 // pred_fallthru
    _
  %v70 = vld [vmem:[%s0] sm:$0xff]
  %v71 = vld [vmem:[%s0 + $0x8] sm:$0xff]
  %v72 = vld [vmem:[%s0 + $0x10] sm:$0xff]
  %v73 = vld [vmem:[%s0 + $0x18] sm:$0xff]
  %v74 = vld [vmem:[%s0 + $0x20] sm:$0xff]
  %v75 = vld [vmem:[%s0 + $0x28] sm:$0xff]
  %v76 = vld [vmem:[%s0 + $0x30] sm:$0xff]
  %v77 = vld [vmem:[%s0 + $0x38] sm:$0xff]
  %v78 = vld [vmem:[%s0 + $0x40] sm:$0xff]
  %v79 = vld [vmem:[%s0 + $0x48] sm:$0xff]
  %v80 = vld [vmem:[%s0 + $0x50] sm:$0xff]
  %v81 = vld [vmem:[%s0 + $0x58] sm:$0xff]
  %s82 = smul.u32 0, 96
  %s83 = smul.u32 0, 256
  %s84 = sshra.s32 %s82, 3
  %s85 = sand.u32 %s82, 7
  %s86 = smul.addr %s84, 4
  %s87 = scalar_lea.vmem %s1, %s86
  %v88 = vld [vmem:[%s87] sm:$0xf]
  %v89 = vld [vmem:[%s87 + $0x4] sm:$0xf]
  %v90 = vld [vmem:[%s87 + $0x8] sm:$0xf]
  %v91 = vld [vmem:[%s87 + $0xc] sm:$0xf]
  %v92 = vld [vmem:[%s87 + $0x10] sm:$0xf]
  %v93 = vld [vmem:[%s87 + $0x14] sm:$0xf]
  %v94 = vld [vmem:[%s87 + $0x18] sm:$0xf]
  %v95 = vld [vmem:[%s87 + $0x1c] sm:$0xf]
  %v96 = vld [vmem:[%s87 + $0x20] sm:$0xf]
  %v97 = vld [vmem:[%s87 + $0x24] sm:$0xf]
  %v98 = vld [vmem:[%s87 + $0x28] sm:$0xf]
  %v99 = vld [vmem:[%s87 + $0x2c] sm:$0xf]
  %s100 = sshra.s32 %s83, 3
  %s101 = sand.u32 %s83, 7
  %s102 = smul.addr %s100, 4
  %s103 = scalar_lea.vmem %s2, %s102
  %v104 = vld [vmem:[%s103] sm:$0xf]
  %v105 = vld [vmem:[%s103 + $0x4] sm:$0xf]
  %v106 = vld [vmem:[%s103 + $0x8] sm:$0xf]
  %v107 = vld [vmem:[%s103 + $0xc] sm:$0xf]
  %v108 = vld [vmem:[%s103 + $0x10] sm:$0xf]
  %v109 = vld [vmem:[%s103 + $0x14] sm:$0xf]
  %v110 = vld [vmem:[%s103 + $0x18] sm:$0xf]
  %v111 = vld [vmem:[%s103 + $0x1c] sm:$0xf]
  %v112 = vld [vmem:[%s103 + $0x20] sm:$0xf]
  %v113 = vld [vmem:[%s103 + $0x24] sm:$0xf]
  %v114 = vld [vmem:[%s103 + $0x28] sm:$0xf]
  %v115 = vld [vmem:[%s103 + $0x2c] sm:$0xf]
  %v116 = vld [vmem:[%s103 + $0x30] sm:$0xf]
  %v117 = vld [vmem:[%s103 + $0x34] sm:$0xf]
  %v118 = vld [vmem:[%s103 + $0x38] sm:$0xf]
  %v119 = vld [vmem:[%s103 + $0x3c] sm:$0xf]
  %v120 = vld [vmem:[%s103 + $0x40] sm:$0xf]
  %v121 = vld [vmem:[%s103 + $0x44] sm:$0xf]
  %v122 = vld [vmem:[%s103 + $0x48] sm:$0xf]
  %v123 = vld [vmem:[%s103 + $0x4c] sm:$0xf]
  %v124 = vld [vmem:[%s103 + $0x50] sm:$0xf]
  %v125 = vld [vmem:[%s103 + $0x54] sm:$0xf]
  %v126 = vld [vmem:[%s103 + $0x58] sm:$0xf]
  %v127 = vld [vmem:[%s103 + $0x5c] sm:$0xf]
  %v128 = vld [vmem:[%s103 + $0x60] sm:$0xf]
  %v129 = vld [vmem:[%s103 + $0x64] sm:$0xf]
  %v130 = vld [vmem:[%s103 + $0x68] sm:$0xf]
  %v131 = vld [vmem:[%s103 + $0x6c] sm:$0xf]
  %v132 = vld [vmem:[%s103 + $0x70] sm:$0xf]
  %v133 = vld [vmem:[%s103 + $0x74] sm:$0xf]
  %v134 = vld [vmem:[%s103 + $0x78] sm:$0xf]
  %v135 = vld [vmem:[%s103 + $0x7c] sm:$0xf]
  %v136 = vld [vmem:[%s3] sm:$0xff]
  %v137 = vld [vmem:[%s3 + $0x8] sm:$0xff]
  %v138 = vld [vmem:[%s3 + $0x10] sm:$0xff]
  %v139 = vld [vmem:[%s3 + $0x18] sm:$0xff]
  %v140 = vld [vmem:[%s3 + $0x20] sm:$0xff]
  %v141 = vld [vmem:[%s3 + $0x28] sm:$0xff]
  %v142 = vld [vmem:[%s3 + $0x30] sm:$0xff]
  %v143 = vld [vmem:[%s3 + $0x38] sm:$0xff]
  %v144 = vld [vmem:[%s3 + $0x40] sm:$0xff]
  %v145 = vld [vmem:[%s3 + $0x48] sm:$0xff]
  %v146 = vld [vmem:[%s3 + $0x50] sm:$0xff]
  %v147 = vld [vmem:[%s3 + $0x58] sm:$0xff]
  %v160 = vunpack.c.l.b16 %v70
  %v161 = vunpack.c.h.b16 %v70
  %v162 = vunpack.c.l.b16 %v71
  %v163 = vunpack.c.h.b16 %v71
  %v164 = vunpack.c.l.b16 %v72
  %v165 = vunpack.c.h.b16 %v72
  %v166 = vunpack.c.l.b16 %v73
  %v167 = vunpack.c.h.b16 %v73
  %v168 = vunpack.c.l.b16 %v74
  %v169 = vunpack.c.h.b16 %v74
  %v170 = vunpack.c.l.b16 %v75
  %v171 = vunpack.c.h.b16 %v75
  %v172 = vunpack.c.l.b16 %v76
  %v173 = vunpack.c.h.b16 %v76
  %v174 = vunpack.c.l.b16 %v77
  %v175 = vunpack.c.h.b16 %v77
  %v176 = vunpack.c.l.b16 %v78
  %v177 = vunpack.c.h.b16 %v78
  %v178 = vunpack.c.l.b16 %v79
  %v179 = vunpack.c.h.b16 %v79
  %v180 = vunpack.c.l.b16 %v80
  %v181 = vunpack.c.h.b16 %v80
  %v182 = vunpack.c.l.b16 %v81
  %v183 = vunpack.c.h.b16 %v81
  %v184 = vpack.c.b16 %v162, %v160
  %v185 = vpack.c.b16 %v163, %v161
  %v186 = vpack.c.b16 %v166, %v164
  %v187 = vpack.c.b16 %v167, %v165
  %v188 = vpack.c.b16 %v170, %v168
  %v189 = vpack.c.b16 %v171, %v169
  %v190 = vpack.c.b16 %v174, %v172
  %v191 = vpack.c.b16 %v175, %v173
  %v192 = vpack.c.b16 %v178, %v176
  %v193 = vpack.c.b16 %v179, %v177
  %v194 = vpack.c.b16 %v182, %v180
  %v195 = vpack.c.b16 %v183, %v181
  %v240 = vunpack.c.l.b16 %v104
  %v241 = vunpack.c.l.b16 %v105
  %v242 = vunpack.c.l.b16 %v106
  %v243 = vunpack.c.l.b16 %v107
  %v244 = vunpack.c.l.b16 %v108
  %v245 = vunpack.c.l.b16 %v109
  %v246 = vunpack.c.l.b16 %v110
  %v247 = vunpack.c.l.b16 %v111
  %v248 = vunpack.c.l.b16 %v112
  %v249 = vunpack.c.l.b16 %v113
  %v250 = vunpack.c.l.b16 %v114
  %v251 = vunpack.c.l.b16 %v115
  %v252 = vunpack.c.l.b16 %v116
  %v253 = vunpack.c.l.b16 %v117
  %v254 = vunpack.c.l.b16 %v118
  %v255 = vunpack.c.l.b16 %v119
  %v256 = vunpack.c.l.b16 %v120
  %v257 = vunpack.c.l.b16 %v121
  %v258 = vunpack.c.l.b16 %v122
  %v259 = vunpack.c.l.b16 %v123
  %v260 = vunpack.c.l.b16 %v124
  %v261 = vunpack.c.l.b16 %v125
  %v262 = vunpack.c.l.b16 %v126
  %v263 = vunpack.c.l.b16 %v127
  %v264 = vunpack.c.l.b16 %v128
  %v265 = vunpack.c.l.b16 %v129
  %v266 = vunpack.c.l.b16 %v130
  %v267 = vunpack.c.l.b16 %v131
  %v268 = vunpack.c.l.b16 %v132
  %v269 = vunpack.c.l.b16 %v133
  %v270 = vunpack.c.l.b16 %v134
  %v271 = vunpack.c.l.b16 %v135
  %v272 = vpack.c.b16 %v241, %v240
  %v273 = vpack.c.b16 %v243, %v242
  %v274 = vpack.c.b16 %v245, %v244
  %v275 = vpack.c.b16 %v247, %v246
  %v276 = vpack.c.b16 %v249, %v248
  %v277 = vpack.c.b16 %v251, %v250
  %v278 = vpack.c.b16 %v253, %v252
  %v279 = vpack.c.b16 %v255, %v254
  %v280 = vpack.c.b16 %v257, %v256
  %v281 = vpack.c.b16 %v259, %v258
  %v282 = vpack.c.b16 %v261, %v260
  %v283 = vpack.c.b16 %v263, %v262
  %v284 = vpack.c.b16 %v265, %v264
  %v285 = vpack.c.b16 %v267, %v266
  %v286 = vpack.c.b16 %v269, %v268
  %v287 = vpack.c.b16 %v271, %v270
  %304 = vmatprep.subr.bf16.mxu0 0
  %305 = vmatpush1.bf16.msra.mxu0 %v272
  %306 = vmatprep.subr.bf16.mxu0 0
  %307 = vmatpush1.bf16.msra.mxu0 %v273
  %308 = vmatprep.subr.bf16.mxu0 0
  %309 = vmatpush1.bf16.msra.mxu0 %v274
  %310 = vmatprep.subr.bf16.mxu0 0
  %311 = vmatpush1.bf16.msra.mxu0 %v275
  %312 = vmatprep.subr.bf16.mxu0 0
  %313 = vmatpush1.bf16.msra.mxu0 %v276
  %314 = vmatprep.subr.bf16.mxu0 0
  %315 = vmatpush1.bf16.msra.mxu0 %v277
  %316 = vmatprep.subr.bf16.mxu0 0
  %317 = vmatpush1.bf16.msra.mxu0 %v278
  %318 = vmatprep.subr.bf16.mxu0 0
  %319 = vmatpush1.bf16.msra.mxu0 %v279
  %320 = vmatprep.subr.bf16.mxu0 0
  %321 = vmatpush1.bf16.msra.mxu0 %v280
  %322 = vmatprep.subr.bf16.mxu0 0
  %323 = vmatpush1.bf16.msra.mxu0 %v281
  %324 = vmatprep.subr.bf16.mxu0 0
  %325 = vmatpush1.bf16.msra.mxu0 %v282
  %326 = vmatprep.subr.bf16.mxu0 0
  %327 = vmatpush1.bf16.msra.mxu0 %v283
  %328 = vmatprep.subr.bf16.mxu0 0
  %329 = vmatpush1.bf16.msra.mxu0 %v284
  %330 = vmatprep.subr.bf16.mxu0 0
  %331 = vmatpush1.bf16.msra.mxu0 %v285
  %332 = vmatprep.subr.bf16.mxu0 0
  %333 = vmatpush1.bf16.msra.mxu0 %v286
  %334 = vmatprep.subr.bf16.mxu0 0
  %335 = vmatpush1.bf16.msra.mxu0 %v287
  %336 = vmatprep.mubr.bf16.mxu0 %v185
  %337 = vmatmul.mubr.bf16.gmra.mrb[0].mxu0 %v184
  %v338 = vpop.f32.mrb[0].mxu0
  %v339 = vadd.f32 0.0, %v338
  %v340 = vpop.f32.mrb[0].mxu0
  %v341 = vpop.f32.mrb[0].mxu0
  %v342 = vadd.f32 0.0, %v341
  %v343 = vpop.f32.mrb[0].mxu0
  %344 = vmatprep.mubr.bf16.mxu0 %v187
  %345 = vmatmul.mubr.bf16.gmra.mrb[0].mxu0 %v186
  %v346 = vpop.f32.mrb[0].mxu0
  %v347 = vadd.f32 0.0, %v346
  %v348 = vpop.f32.mrb[0].mxu0
  %v349 = vpop.f32.mrb[0].mxu0
  %v350 = vadd.f32 0.0, %v349
  %v351 = vpop.f32.mrb[0].mxu0
  %352 = vmatprep.mubr.bf16.mxu0 %v189
  %353 = vmatmul.mubr.bf16.gmra.mrb[0].mxu0 %v188
  %v354 = vpop.f32.mrb[0].mxu0
  %v355 = vadd.f32 0.0, %v354
  %v356 = vpop.f32.mrb[0].mxu0
  %v357 = vpop.f32.mrb[0].mxu0
  %v358 = vadd.f32 0.0, %v357
  %v359 = vpop.f32.mrb[0].mxu0
  %360 = vmatprep.mubr.bf16.mxu0 %v191
  %361 = vmatmul.mubr.bf16.gmra.mrb[0].mxu0 %v190
  %v362 = vpop.f32.mrb[0].mxu0
  %v363 = vadd.f32 0.0, %v362
  %v364 = vpop.f32.mrb[0].mxu0
  %v365 = vpop.f32.mrb[0].mxu0
  %v366 = vadd.f32 0.0, %v365
  %v367 = vpop.f32.mrb[0].mxu0
  %368 = vmatprep.mubr.bf16.mxu0 %v193
  %369 = vmatmul.mubr.bf16.gmra.mrb[0].mxu0 %v192
  %v370 = vpop.f32.mrb[0].mxu0
  %v371 = vadd.f32 0.0, %v370
  %v372 = vpop.f32.mrb[0].mxu0
  %v373 = vpop.f32.mrb[0].mxu0
  %v374 = vadd.f32 0.0, %v373
  %v375 = vpop.f32.mrb[0].mxu0
  %376 = vmatprep.mubr.bf16.mxu0 %v195
  %377 = vmatmul.mubr.bf16.gmra.mrb[0].mxu0 %v194
  %v378 = vpop.f32.mrb[0].mxu0
  %v379 = vadd.f32 0.0, %v378
  %v380 = vpop.f32.mrb[0].mxu0
  %v381 = vpop.f32.mrb[0].mxu0
  %v382 = vadd.f32 0.0, %v381
  %v383 = vpop.f32.mrb[0].mxu0
  %384 = vdwg.mxu0
  %v385 = vadd.f32 %v136, %v339
  %v386 = vadd.f32 %v137, %v342
  %v387 = vadd.f32 %v138, %v347
  %v388 = vadd.f32 %v139, %v350
  %v389 = vadd.f32 %v140, %v355
  %v390 = vadd.f32 %v141, %v358
  %v391 = vadd.f32 %v142, %v363
  %v392 = vadd.f32 %v143, %v366
  %v393 = vadd.f32 %v144, %v371
  %v394 = vadd.f32 %v145, %v374
  %v395 = vadd.f32 %v146, %v379
  %v396 = vadd.f32 %v147, %v382
  %397 = vst [vmem:[%s3] sm:$0xff] %v385
  %398 = vst [vmem:[%s3 + $0x8] sm:$0xff] %v386
  %399 = vst [vmem:[%s3 + $0x10] sm:$0xff] %v387
  %400 = vst [vmem:[%s3 + $0x18] sm:$0xff] %v388
  %401 = vst [vmem:[%s3 + $0x20] sm:$0xff] %v389
  %402 = vst [vmem:[%s3 + $0x28] sm:$0xff] %v390
  %403 = vst [vmem:[%s3 + $0x30] sm:$0xff] %v391
  %404 = vst [vmem:[%s3 + $0x38] sm:$0xff] %v392
  %405 = vst [vmem:[%s3 + $0x40] sm:$0xff] %v393
  %406 = vst [vmem:[%s3 + $0x48] sm:$0xff] %v394
  %407 = vst [vmem:[%s3 + $0x50] sm:$0xff] %v395
  %408 = vst [vmem:[%s3 + $0x58] sm:$0xff] %v396
  %s409 = scalar_lea.vmem %s4, %s83
  %v410 = vld [vmem:[%s409] sm:$0xff]
  %v411 = vld [vmem:[%s409 + $0x8] sm:$0xff]
  %v412 = vld [vmem:[%s409 + $0x10] sm:$0xff]
  %v413 = vld [vmem:[%s409 + $0x18] sm:$0xff]
  %v414 = vld [vmem:[%s409 + $0x20] sm:$0xff]
  %v415 = vld [vmem:[%s409 + $0x28] sm:$0xff]
  %v416 = vld [vmem:[%s409 + $0x30] sm:$0xff]
  %v417 = vld [vmem:[%s409 + $0x38] sm:$0xff]
  %v418 = vld [vmem:[%s409 + $0x40] sm:$0xff]
  %v419 = vld [vmem:[%s409 + $0x48] sm:$0xff]
  %v420 = vld [vmem:[%s409 + $0x50] sm:$0xff]
  %v421 = vld [vmem:[%s409 + $0x58] sm:$0xff]
  %v422 = vld [vmem:[%s409 + $0x60] sm:$0xff]
  %v423 = vld [vmem:[%s409 + $0x68] sm:$0xff]
  %v424 = vld [vmem:[%s409 + $0x70] sm:$0xff]
  %v425 = vld [vmem:[%s409 + $0x78] sm:$0xff]
  %v426 = vld [vmem:[%s409 + $0x80] sm:$0xff]
  %v427 = vld [vmem:[%s409 + $0x88] sm:$0xff]
  %v428 = vld [vmem:[%s409 + $0x90] sm:$0xff]
  %v429 = vld [vmem:[%s409 + $0x98] sm:$0xff]
  %v430 = vld [vmem:[%s409 + $0xa0] sm:$0xff]
  %v431 = vld [vmem:[%s409 + $0xa8] sm:$0xff]
  %v432 = vld [vmem:[%s409 + $0xb0] sm:$0xff]
  %v433 = vld [vmem:[%s409 + $0xb8] sm:$0xff]
  %v434 = vld [vmem:[%s409 + $0xc0] sm:$0xff]
  %v435 = vld [vmem:[%s409 + $0xc8] sm:$0xff]
  %v436 = vld [vmem:[%s409 + $0xd0] sm:$0xff]
  %v437 = vld [vmem:[%s409 + $0xd8] sm:$0xff]
  %v438 = vld [vmem:[%s409 + $0xe0] sm:$0xff]
  %v439 = vld [vmem:[%s409 + $0xe8] sm:$0xff]
  %v440 = vld [vmem:[%s409 + $0xf0] sm:$0xff]
  %v441 = vld [vmem:[%s409 + $0xf8] sm:$0xff]
  %442 = vxpose.xlu0.c.b16.start [1/8] %v184, 128
  %443 = vxpose.xlu0.c.b16.cont [2/8] %v186, 128
  %444 = vxpose.xlu0.c.b16.cont [3/8] %v188, 128
  %445 = vxpose.xlu0.c.b16.cont [4/8] %v190, 128
  %446 = vxpose.xlu0.c.b16.cont [5/8] %v192, 128
  %447 = vxpose.xlu0.c.b16.cont [6/8] %v194, 128
  %448 = vxpose.xlu0.c.b16.cont [7/8] 0, 128
  %449 = vxpose.xlu0.c.b16.end [8/8] 0, 128
  %v450 = vpop.trf.xlu0
  %v451 = vpop.trf.xlu0
  %v452 = vpop.trf.xlu0
  %v453 = vpop.trf.xlu0
  %v454 = vpop.trf.xlu0
  %v455 = vpop.trf.xlu0
  %v456 = vpop.trf.xlu0
  %v457 = vpop.trf.xlu0
  %458 = vxpose.xlu0.c.b16.start [1/8] %v185, 128
  %459 = vxpose.xlu0.c.b16.cont [2/8] %v187, 128
  %460 = vxpose.xlu0.c.b16.cont [3/8] %v189, 128
  %461 = vxpose.xlu0.c.b16.cont [4/8] %v191, 128
  %462 = vxpose.xlu0.c.b16.cont [5/8] %v193, 128
  %463 = vxpose.xlu0.c.b16.cont [6/8] %v195, 128
  %464 = vxpose.xlu0.c.b16.cont [7/8] 0, 128
  %465 = vxpose.xlu0.c.b16.end [8/8] 0, 128
  %v466 = vpop.trf.xlu0
  %v467 = vpop.trf.xlu0
  %v468 = vpop.trf.xlu0
  %v469 = vpop.trf.xlu0
  %v470 = vpop.trf.xlu0
  %v471 = vpop.trf.xlu0
  %v472 = vpop.trf.xlu0
  %v473 = vpop.trf.xlu0
  %v486 = vunpack.c.l.b16 %v88
  %v487 = vunpack.c.l.b16 %v89
  %v488 = vunpack.c.l.b16 %v90
  %v489 = vunpack.c.l.b16 %v91
  %v490 = vunpack.c.l.b16 %v92
  %v491 = vunpack.c.l.b16 %v93
  %v492 = vunpack.c.l.b16 %v94
  %v493 = vunpack.c.l.b16 %v95
  %v494 = vunpack.c.l.b16 %v96
  %v495 = vunpack.c.l.b16 %v97
  %v496 = vunpack.c.l.b16 %v98
  %v497 = vunpack.c.l.b16 %v99
  %v498 = vpack.c.b16 %v487, %v486
  %v499 = vpack.c.b16 %v489, %v488
  %v500 = vpack.c.b16 %v491, %v490
  %v501 = vpack.c.b16 %v493, %v492
  %v502 = vpack.c.b16 %v495, %v494
  %v503 = vpack.c.b16 %v497, %v496
  %vm510 = vcmask 785408
  %v512 = vsel %vm510, %v450, 0
  %v515 = vsel %vm510, %v451, 0
  %v518 = vsel %vm510, %v452, 0
  %v521 = vsel %vm510, %v453, 0
  %v524 = vsel %vm510, %v454, 0
  %v527 = vsel %vm510, %v455, 0
  %v530 = vsel %vm510, %v456, 0
  %v533 = vsel %vm510, %v457, 0
  %v536 = vsel %vm510, %v466, 0
  %v539 = vsel %vm510, %v467, 0
  %v542 = vsel %vm510, %v468, 0
  %v545 = vsel %vm510, %v469, 0
  %v548 = vsel %vm510, %v470, 0
  %v551 = vsel %vm510, %v471, 0
  %v554 = vsel %vm510, %v472, 0
  %v557 = vsel %vm510, %v473, 0
  %559 = vmatprep.subr.bf16.mxu0 0
  %560 = vmatpush1.bf16.msra.mxu0 %v498
  %561 = vmatprep.subr.bf16.mxu0 0
  %562 = vmatpush1.bf16.msra.mxu0 %v499
  %563 = vmatprep.subr.bf16.mxu0 0
  %564 = vmatpush1.bf16.msra.mxu0 %v500
  %565 = vmatprep.subr.bf16.mxu0 0
  %566 = vmatpush1.bf16.msra.mxu0 %v501
  %567 = vmatprep.subr.bf16.mxu0 0
  %568 = vmatpush1.bf16.msra.mxu0 %v502
  %569 = vmatprep.subr.bf16.mxu0 0
  %570 = vmatpush1.bf16.msra.mxu0 %v503
  %571 = vmatprep.subr.bf16.mxu0 0
  %572 = vmatpush1.bf16.msra.mxu0 0
  %573 = vmatprep.subr.bf16.mxu0 0
  %574 = vmatpush1.bf16.msra.mxu0 0
  %575 = vmatprep.subr.bf16.mxu0 0
  %576 = vmatpush1.bf16.msra.mxu0 0
  %577 = vmatprep.subr.bf16.mxu0 0
  %578 = vmatpush1.bf16.msra.mxu0 0
  %579 = vmatprep.subr.bf16.mxu0 0
  %580 = vmatpush1.bf16.msra.mxu0 0
  %581 = vmatprep.subr.bf16.mxu0 0
  %582 = vmatpush1.bf16.msra.mxu0 0
  %583 = vmatprep.subr.bf16.mxu0 0
  %584 = vmatpush1.bf16.msra.mxu0 0
  %585 = vmatprep.subr.bf16.mxu0 0
  %586 = vmatpush1.bf16.msra.mxu0 0
  %587 = vmatprep.subr.bf16.mxu0 0
  %588 = vmatpush1.bf16.msra.mxu0 0
  %589 = vmatprep.subr.bf16.mxu0 0
  %590 = vmatpush1.bf16.msra.mxu0 0
  %591 = vmatprep.mubr.bf16.mxu0 0
  %592 = vmatmul.mubr.bf16.gmra.mrb[0].mxu0 %v512
  %v593 = vpop.f32.mrb[0].mxu0
  %v594 = vadd.f32 0.0, %v593
  %v595 = vpop.f32.mrb[0].mxu0
  %v596 = vpop.f32.mrb[0].mxu0
  %v597 = vadd.f32 0.0, %v596
  %v598 = vpop.f32.mrb[0].mxu0
  %599 = vmatprep.mubr.bf16.mxu0 0
  %600 = vmatmul.mubr.bf16.gmra.mrb[0].mxu0 %v515
  %v601 = vpop.f32.mrb[0].mxu0
  %v602 = vadd.f32 0.0, %v601
  %v603 = vpop.f32.mrb[0].mxu0
  %v604 = vpop.f32.mrb[0].mxu0
  %v605 = vadd.f32 0.0, %v604
  %v606 = vpop.f32.mrb[0].mxu0
  %607 = vmatprep.mubr.bf16.mxu0 0
  %608 = vmatmul.mubr.bf16.gmra.mrb[0].mxu0 %v518
  %v609 = vpop.f32.mrb[0].mxu0
  %v610 = vadd.f32 0.0, %v609
  %v611 = vpop.f32.mrb[0].mxu0
  %v612 = vpop.f32.mrb[0].mxu0
  %v613 = vadd.f32 0.0, %v612
  %v614 = vpop.f32.mrb[0].mxu0
  %615 = vmatprep.mubr.bf16.mxu0 0
  %616 = vmatmul.mubr.bf16.gmra.mrb[0].mxu0 %v521
  %v617 = vpop.f32.mrb[0].mxu0
  %v618 = vadd.f32 0.0, %v617
  %v619 = vpop.f32.mrb[0].mxu0
  %v620 = vpop.f32.mrb[0].mxu0
  %v621 = vadd.f32 0.0, %v620
  %v622 = vpop.f32.mrb[0].mxu0
  %623 = vmatprep.mubr.bf16.mxu0 0
  %624 = vmatmul.mubr.bf16.gmra.mrb[0].mxu0 %v524
  %v625 = vpop.f32.mrb[0].mxu0
  %v626 = vadd.f32 0.0, %v625
  %v627 = vpop.f32.mrb[0].mxu0
  %v628 = vpop.f32.mrb[0].mxu0
  %v629 = vadd.f32 0.0, %v628
  %v630 = vpop.f32.mrb[0].mxu0
  %631 = vmatprep.mubr.bf16.mxu0 0
  %632 = vmatmul.mubr.bf16.gmra.mrb[0].mxu0 %v527
  %v633 = vpop.f32.mrb[0].mxu0
  %v634 = vadd.f32 0.0, %v633
  %v635 = vpop.f32.mrb[0].mxu0
  %v636 = vpop.f32.mrb[0].mxu0
  %v637 = vadd.f32 0.0, %v636
  %v638 = vpop.f32.mrb[0].mxu0
  %639 = vmatprep.mubr.bf16.mxu0 0
  %640 = vmatmul.mubr.bf16.gmra.mrb[0].mxu0 %v530
  %v641 = vpop.f32.mrb[0].mxu0
  %v642 = vadd.f32 0.0, %v641
  %v643 = vpop.f32.mrb[0].mxu0
  %v644 = vpop.f32.mrb[0].mxu0
  %v645 = vadd.f32 0.0, %v644
  %v646 = vpop.f32.mrb[0].mxu0
  %647 = vmatprep.mubr.bf16.mxu0 0
  %648 = vmatmul.mubr.bf16.gmra.mrb[0].mxu0 %v533
  %v649 = vpop.f32.mrb[0].mxu0
  %v650 = vadd.f32 0.0, %v649
  %v651 = vpop.f32.mrb[0].mxu0
  %v652 = vpop.f32.mrb[0].mxu0
  %v653 = vadd.f32 0.0, %v652
  %v654 = vpop.f32.mrb[0].mxu0
  %655 = vmatprep.mubr.bf16.mxu0 0
  %656 = vmatmul.mubr.bf16.gmra.mrb[0].mxu0 %v536
  %v657 = vpop.f32.mrb[0].mxu0
  %v658 = vadd.f32 0.0, %v657
  %v659 = vpop.f32.mrb[0].mxu0
  %v660 = vpop.f32.mrb[0].mxu0
  %v661 = vadd.f32 0.0, %v660
  %v662 = vpop.f32.mrb[0].mxu0
  %663 = vmatprep.mubr.bf16.mxu0 0
  %664 = vmatmul.mubr.bf16.gmra.mrb[0].mxu0 %v539
  %v665 = vpop.f32.mrb[0].mxu0
  %v666 = vadd.f32 0.0, %v665
  %v667 = vpop.f32.mrb[0].mxu0
  %v668 = vpop.f32.mrb[0].mxu0
  %v669 = vadd.f32 0.0, %v668
  %v670 = vpop.f32.mrb[0].mxu0
  %671 = vmatprep.mubr.bf16.mxu0 0
  %672 = vmatmul.mubr.bf16.gmra.mrb[0].mxu0 %v542
  %v673 = vpop.f32.mrb[0].mxu0
  %v674 = vadd.f32 0.0, %v673
  %v675 = vpop.f32.mrb[0].mxu0
  %v676 = vpop.f32.mrb[0].mxu0
  %v677 = vadd.f32 0.0, %v676
  %v678 = vpop.f32.mrb[0].mxu0
  %679 = vmatprep.mubr.bf16.mxu0 0
  %680 = vmatmul.mubr.bf16.gmra.mrb[0].mxu0 %v545
  %v681 = vpop.f32.mrb[0].mxu0
  %v682 = vadd.f32 0.0, %v681
  %v683 = vpop.f32.mrb[0].mxu0
  %v684 = vpop.f32.mrb[0].mxu0
  %v685 = vadd.f32 0.0, %v684
  %v686 = vpop.f32.mrb[0].mxu0
  %687 = vmatprep.mubr.bf16.mxu0 0
  %688 = vmatmul.mubr.bf16.gmra.mrb[0].mxu0 %v548
  %v689 = vpop.f32.mrb[0].mxu0
  %v690 = vadd.f32 0.0, %v689
  %v691 = vpop.f32.mrb[0].mxu0
  %v692 = vpop.f32.mrb[0].mxu0
  %v693 = vadd.f32 0.0, %v692
  %v694 = vpop.f32.mrb[0].mxu0
  %695 = vmatprep.mubr.bf16.mxu0 0
  %696 = vmatmul.mubr.bf16.gmra.mrb[0].mxu0 %v551
  %v697 = vpop.f32.mrb[0].mxu0
  %v698 = vadd.f32 0.0, %v697
  %v699 = vpop.f32.mrb[0].mxu0
  %v700 = vpop.f32.mrb[0].mxu0
  %v701 = vadd.f32 0.0, %v700
  %v702 = vpop.f32.mrb[0].mxu0
  %703 = vmatprep.mubr.bf16.mxu0 0
  %704 = vmatmul.mubr.bf16.gmra.mrb[0].mxu0 %v554
  %v705 = vpop.f32.mrb[0].mxu0
  %v706 = vadd.f32 0.0, %v705
  %v707 = vpop.f32.mrb[0].mxu0
  %v708 = vpop.f32.mrb[0].mxu0
  %v709 = vadd.f32 0.0, %v708
  %v710 = vpop.f32.mrb[0].mxu0
  %711 = vmatprep.mubr.bf16.mxu0 0
  %712 = vmatmul.mubr.bf16.gmra.mrb[0].mxu0 %v557
  %v713 = vpop.f32.mrb[0].mxu0
  %v714 = vadd.f32 0.0, %v713
  %v715 = vpop.f32.mrb[0].mxu0
  %v716 = vpop.f32.mrb[0].mxu0
  %v717 = vadd.f32 0.0, %v716
  %v718 = vpop.f32.mrb[0].mxu0
  %719 = vdwg.mxu0
  %v720 = vadd.f32 %v410, %v594
  %v721 = vadd.f32 %v411, %v597
  %v722 = vadd.f32 %v412, %v602
  %v723 = vadd.f32 %v413, %v605
  %v724 = vadd.f32 %v414, %v610
  %v725 = vadd.f32 %v415, %v613
  %v726 = vadd.f32 %v416, %v618
  %v727 = vadd.f32 %v417, %v621
  %v728 = vadd.f32 %v418, %v626
  %v729 = vadd.f32 %v419, %v629
  %v730 = vadd.f32 %v420, %v634
  %v731 = vadd.f32 %v421, %v637
  %v732 = vadd.f32 %v422, %v642
  %v733 = vadd.f32 %v423, %v645
  %v734 = vadd.f32 %v424, %v650
  %v735 = vadd.f32 %v425, %v653
  %v736 = vadd.f32 %v426, %v658
  %v737 = vadd.f32 %v427, %v661
  %v738 = vadd.f32 %v428, %v666
  %v739 = vadd.f32 %v429, %v669
  %v740 = vadd.f32 %v430, %v674
  %v741 = vadd.f32 %v431, %v677
  %v742 = vadd.f32 %v432, %v682
  %v743 = vadd.f32 %v433, %v685
  %v744 = vadd.f32 %v434, %v690
  %v745 = vadd.f32 %v435, %v693
  %v746 = vadd.f32 %v436, %v698
  %v747 = vadd.f32 %v437, %v701
  %v748 = vadd.f32 %v438, %v706
  %v749 = vadd.f32 %v439, %v709
  %v750 = vadd.f32 %v440, %v714
  %v751 = vadd.f32 %v441, %v717
  %752 = vst [vmem:[%s409] sm:$0xff] %v720
  %753 = vst [vmem:[%s409 + $0x8] sm:$0xff] %v721
  %754 = vst [vmem:[%s409 + $0x10] sm:$0xff] %v722
  %755 = vst [vmem:[%s409 + $0x18] sm:$0xff] %v723
  %756 = vst [vmem:[%s409 + $0x20] sm:$0xff] %v724
  %757 = vst [vmem:[%s409 + $0x28] sm:$0xff] %v725
  %758 = vst [vmem:[%s409 + $0x30] sm:$0xff] %v726
  %759 = vst [vmem:[%s409 + $0x38] sm:$0xff] %v727
  %760 = vst [vmem:[%s409 + $0x40] sm:$0xff] %v728
  %761 = vst [vmem:[%s409 + $0x48] sm:$0xff] %v729
  %762 = vst [vmem:[%s409 + $0x50] sm:$0xff] %v730
  %763 = vst [vmem:[%s409 + $0x58] sm:$0xff] %v731
  %764 = vst [vmem:[%s409 + $0x60] sm:$0xff] %v732
  %765 = vst [vmem:[%s409 + $0x68] sm:$0xff] %v733
  %766 = vst [vmem:[%s409 + $0x70] sm:$0xff] %v734
  %767 = vst [vmem:[%s409 + $0x78] sm:$0xff] %v735
  %768 = vst [vmem:[%s409 + $0x80] sm:$0xff] %v736
  %769 = vst [vmem:[%s409 + $0x88] sm:$0xff] %v737
  %770 = vst [vmem:[%s409 + $0x90] sm:$0xff] %v738
  %771 = vst [vmem:[%s409 + $0x98] sm:$0xff] %v739
  %772 = vst [vmem:[%s409 + $0xa0] sm:$0xff] %v740
  %773 = vst [vmem:[%s409 + $0xa8] sm:$0xff] %v741
  %774 = vst [vmem:[%s409 + $0xb0] sm:$0xff] %v742
  %775 = vst [vmem:[%s409 + $0xb8] sm:$0xff] %v743
  %776 = vst [vmem:[%s409 + $0xc0] sm:$0xff] %v744
  %777 = vst [vmem:[%s409 + $0xc8] sm:$0xff] %v745
  %778 = vst [vmem:[%s409 + $0xd0] sm:$0xff] %v746
  %779 = vst [vmem:[%s409 + $0xd8] sm:$0xff] %v747
  %780 = vst [vmem:[%s409 + $0xe0] sm:$0xff] %v748
  %781 = vst [vmem:[%s409 + $0xe8] sm:$0xff] %v749
  %782 = vst [vmem:[%s409 + $0xf0] sm:$0xff] %v750
  %783 = vst [vmem:[%s409 + $0xf8] sm:$0xff] %v751
  // Predicated region
  $region22: #{_propagate_layer.1} parent=0 // pred_check
    _
  $region23: #{_propagate_layer.1} parent=0 // pred_check_branch
    %785 = sbr.rel (0) target = $region25
  $region24: #{_propagate_layer.1} parent=0 // pred_region
    _
  $region25: #{_propagate_layer.1} parent=0 // pred_fallthru
    _
  // Predicated region
  $region26: #{_propagate_layer.1} parent=0 // pred_check
    _
  $region27: #{_propagate_layer.1} parent=0 // pred_check_branch
    %787 = sbr.rel (0) target = $region29
  $region28: #{_propagate_layer.1} parent=0 // pred_region
    _
  $region29: #{_propagate_layer.1} parent=0 // pred_fallthru
    _
  // Predicated region
  $region30: #{_propagate_layer.1} parent=0 // pred_check
    _
  $region31: #{_propagate_layer.1} parent=0 // pred_check_branch
    %789 = sbr.rel (0) target = $region33
  $region32: #{_propagate_layer.1} parent=0 // pred_region
    _
  $region33: #{_propagate_layer.1} parent=0 // pred_fallthru
    _
  // Predicated region
  $region34: #{_propagate_layer.1} parent=0 // pred_check
    _
  $region35: #{_propagate_layer.1} parent=0 // pred_check_branch
    %791 = sbr.rel (0) target = $region37
  $region36: #{_propagate_layer.1} parent=0 // pred_region
    _
  $region37: #{_propagate_layer.1} parent=0 // pred_fallthru
    _

</llo_original>
